<compile_context>
chip_gen: v6e
topology: v6e:2x2x1
jax: 0.10.0
libtpu: 0.0.40
codegen_flags: <defaults>
</compile_context>

<pallas_src>
import functools

import jax
import jax.numpy as jnp
from jax.experimental import pallas as pl
from jax.experimental.pallas import tpu as pltpu


# Below this many views XLA's fused elementwise graph wins outright over any
# pallas_call (launch overhead, ~0.35us/grid-step, wrapper layout passes).
_PALLAS_MIN_N = 4096

# Lanes per grid step for the Pallas path.  At 16384 lanes the double-buffered
# in+out VMEM footprint is ~2.4 MiB -- far under the 32 MiB scoped-VMEM
# default and v7x's 64 MiB physical VMEM, so one value fits v5e/v6e/v7x.
_MAX_TILE_N = 16384


# ----------------------------------------------------------------------------
# Kernel 1: calibrated path, rot_representation == 'quat' (the module default)
#   x_ref: (7, TILE_N) rows [w, x, y, z, tx, ty, tz] (real-part-first quat, as
#          in pytorch3d.transforms.quaternion_to_matrix), views on lanes.
#   o_ref: (12, TILE_N) = row r*4+c of the flattened Ps = cat(R(q), t, dim=-1)
# ----------------------------------------------------------------------------
def _quat_view_kernel(x_ref, o_ref):
    f32 = jnp.float32
    odt = o_ref.dtype

    r = x_ref[0:1, :].astype(f32)
    i = x_ref[1:2, :].astype(f32)
    j = x_ref[2:3, :].astype(f32)
    k = x_ref[3:4, :].astype(f32)
    # pytorch3d: two_s = 2.0 / (q * q).sum(-1)  (handles unnormalized quats).
    # Exact reciprocal (approx=False) keeps 1e-5-level accuracy; switching to
    # approx=True + one NR step is only worth it if the VALU ever shows up.
    two_s = 2.0 * pl.reciprocal(r * r + i * i + j * j + k * k, approx=False)

    # Translation columns: straight copies from x_ref (no extra live strips).
    o_ref[3:4, :] = x_ref[4:5, :].astype(odt)     # t_x
    o_ref[7:8, :] = x_ref[5:6, :].astype(odt)     # t_y
    o_ref[11:12, :] = x_ref[6:7, :].astype(odt)   # t_z

    # Rotation rows in the standard si/sj/sk product form; each product is
    # consumed by the store right after it is formed, keeping only
    # {r,i,j,k,si,sj,sk} (+ ~2 temps) live at any point.
    si = two_s * i
    sj = two_s * j
    sk = two_s * k
    o_ref[0:1, :] = (1.0 - (sj * j + sk * k)).astype(odt)    # m00
    o_ref[5:6, :] = (1.0 - (si * i + sk * k)).astype(odt)    # m11
    o_ref[10:11, :] = (1.0 - (si * i + sj * j)).astype(odt)  # m22
    o_ref[1:2, :] = (si * j - sk * r).astype(odt)            # m01
    o_ref[4:5, :] = (si * j + sk * r).astype(odt)            # m10
    o_ref[2:3, :] = (si * k + sj * r).astype(odt)            # m02
    o_ref[8:9, :] = (si * k - sj * r).astype(odt)            # m20
    o_ref[6:7, :] = (sj * k - si * r).astype(odt)            # m12
    o_ref[9:10, :] = (sj * k + si * r).astype(odt)           # m21


# ----------------------------------------------------------------------------
# Kernel 2: uncalibrated path (out_channels == 12)
#   x_ref: (12, TILE_N) = flattened 3x4 projection matrix, element [r*4+c, n]
#   Normalization: 'Chirality' / 'Differentiable Chirality' / 'Frobenius'
#   (normalize_output=None is a pure reshape handled in the wrapper).
# ----------------------------------------------------------------------------
def _uncalib_view_kernel(x_ref, o_ref, *, normalize_output):
    f32 = jnp.float32
    odt = o_ref.dtype

    def row(t):
        return x_ref[t:t + 1, :].astype(f32)

    if normalize_output in ("Chirality", "Differentiable Chirality"):
        g, h, ii = row(8), row(9), row(10)
        inv_row2 = jax.lax.rsqrt(g * g + h * h + ii * ii)        # EUP rsqrt
        a, b, c = row(0), row(1), row(2)
        d, e, f = row(4), row(5), row(6)
        det = a * (e * ii - f * h) - b * (d * ii - f * g) + c * (d * h - e * g)
        if normalize_output == "Chirality":
            # NOTE: sign(det)==0 when det is exactly 0 zeroes the whole matrix;
            # this matches the torch reference semantics (intentional).
            scale = jnp.sign(det) * inv_row2
        else:
            # Differentiable Chirality: softsign(det * 1e4) / ||P[2, 0:3]||.
            # (det*1e4 can overflow for huge dets; same behavior as reference.)
            s = det * 10000.0
            scale = (s / (1.0 + jnp.abs(s))) * inv_row2
    elif normalize_output == "Frobenius":
        # Pairwise tree sum of the 12 squared rows (VPU chain depth 4 instead
        # of a 12-step serial add), then a single EUP rsqrt.
        sq = [row(t) * row(t) for t in range(12)]
        while len(sq) > 1:
            nxt = [sq[t] + sq[t + 1] for t in range(0, len(sq) - 1, 2)]
            if len(sq) % 2:
                nxt.append(sq[-1])
            sq = nxt
        scale = jax.lax.rsqrt(sq[0])
    else:
        scale = None

    # Stream the 12 output rows: only `scale` + one row live at a time.
    for t in range(12):
        v = row(t)
        if scale is not None:
            v = v * scale
        o_ref[t:t + 1, :] = v.astype(odt)


# ----------------------------------------------------------------------------
# Pallas wrapper (large-N path): one XLA transpose to the lane-dense (C, N)
# layout, tiled/parallel grid over N with ragged last block (no pad, no
# slice), then one XLA transpose back + free contiguous reshape(-1, 3, 4).
# ----------------------------------------------------------------------------
def _round_up(v, m):
    return ((v + m - 1) // m) * m


def _run_view_kernel(kernel, x, out_rows):
    n, c = x.shape
    # Cap tile_n so the grid has >= 2 steps whenever this path engages
    # (n >= _PALLAS_MIN_N): lets "parallel" shard across v7x's 2 TensorCores
    # (measured no-op on single-TC v5e/v6e, harmless there).
    tile_n = min(_MAX_TILE_N, _round_up(pl.cdiv(n, 2), 128))
    n_blocks = pl.cdiv(n, tile_n)

    xt = x.T                                   # single XLA copy -> (C, N)

    out_t = pl.pallas_call(
        kernel,
        out_shape=jax.ShapeDtypeStruct((out_rows, n), x.dtype),
        grid=(n_blocks,),
        in_specs=[pl.BlockSpec((c, tile_n), lambda i: (0, i))],
        out_specs=pl.BlockSpec((out_rows, tile_n), lambda i: (0, i)),
        compiler_params=pltpu.CompilerParams(
            dimension_semantics=("parallel",)),
    )(xt)
    return out_t                               # (out_rows, N) lane-dense


# ----------------------------------------------------------------------------
# Pure-JAX implementations: small-N fast path AND references for the Pallas
# path.  (XLA fuses these tiny elementwise graphs into a single kernel.)
# ----------------------------------------------------------------------------
def _quat_views_jax(x):
    """x: (N, 7) -> (N, 3, 4).  quaternion_to_matrix + translation concat."""
    q = x[:, :4]
    r, i, j, k = q[:, 0], q[:, 1], q[:, 2], q[:, 3]
    two_s = 2.0 / jnp.sum(q * q, axis=-1)
    R = jnp.stack(
        [
            1 - two_s * (j * j + k * k), two_s * (i * j - k * r), two_s * (i * k + j * r),
            two_s * (i * j + k * r), 1 - two_s * (i * i + k * k), two_s * (j * k - i * r),
            two_s * (i * k - j * r), two_s * (j * k + i * r), 1 - two_s * (i * i + j * j),
        ],
        axis=-1,
    ).reshape(-1, 3, 3)
    t = x[:, -3:]
    return jnp.concatenate([R, t[:, :, None]], axis=-1)


def _uncalib_views_jax(x, normalize_output):
    """x: (N, 12) -> (N, 3, 4) with optional projection-matrix normalization."""
    Ps = x.reshape(-1, 3, 4)
    if normalize_output in ("Chirality", "Differentiable Chirality"):
        M = Ps[:, 0:3, 0:3]
        # Explicit cofactor determinant (matches the kernel's math exactly).
        det = (M[:, 0, 0] * (M[:, 1, 1] * M[:, 2, 2] - M[:, 1, 2] * M[:, 2, 1])
               - M[:, 0, 1] * (M[:, 1, 0] * M[:, 2, 2] - M[:, 1, 2] * M[:, 2, 0])
               + M[:, 0, 2] * (M[:, 1, 0] * M[:, 2, 1] - M[:, 1, 1] * M[:, 2, 0]))
        row2 = jnp.sqrt(jnp.sum(Ps[:, 2, 0:3] * Ps[:, 2, 0:3], axis=1))
        if normalize_output == "Chirality":
            scale = jnp.sign(det) / row2
        else:
            s = det * 10000.0
            scale = (s / (1.0 + jnp.abs(s))) / row2
        Ps = Ps * scale.reshape(-1, 1, 1)
    elif normalize_output == "Frobenius":
        Ps = Ps / jnp.linalg.norm(Ps.reshape(-1, 12), axis=-1).reshape(-1, 1, 1)
    return Ps


# ----------------------------------------------------------------------------
# Public API mirroring BaseNet.extract_* semantics
# ----------------------------------------------------------------------------
def extract_view_outputs_calibrated_quat(x):
    """x: (N, 7) -> {'Ps_norm': (N, 3, 4)}   (calibrated, rot='quat')."""
    n = x.shape[0]
    if n < _PALLAS_MIN_N:
        return {"Ps_norm": _quat_views_jax(x)}
    ps_rows = _run_view_kernel(_quat_view_kernel, x, 12)       # (12, N)
    return {"Ps_norm": ps_rows.T.reshape(-1, 3, 4)}


def extract_view_outputs_uncalibrated(x, normalize_output=None):
    """x: (N, 12) -> {'Ps_norm': (N, 3, 4)}   (uncalibrated path)."""
    if normalize_output is None:
        return {"Ps_norm": x.reshape(-1, 3, 4)}   # pure (free) reshape
    n = x.shape[0]
    if n < _PALLAS_MIN_N:
        return {"Ps_norm": _uncalib_views_jax(x, normalize_output)}
    kernel = functools.partial(_uncalib_view_kernel,
                               normalize_output=normalize_output)
    ps_rows = _run_view_kernel(kernel, x, 12)                  # (12, N)
    return {"Ps_norm": ps_rows.T.reshape(-1, 3, 4)}


def extract_scenepoint_outputs(pts_3D):
    """geo_utils.ones_padding: (B, 3, M) -> (B, 4, M).  Pure concat: JAX glue."""
    # TODO(synk): fuse the ones-padding + view transform into the producing
    # head's Pallas kernel for the small-N regime (single HBM round-trip).
    ones = jnp.ones(pts_3D.shape[:-2] + (1,) + pts_3D.shape[-1:], pts_3D.dtype)
    return {"pts3D": jnp.concatenate([pts_3D, ones], axis=-2)}


def extract_depth_outputs(depth_out):
    return {"depths": depth_out}


# TODO(synk): rot_representation='svd' path (geo_utils.project_to_rot) needs an
# SVD, which has no Pallas TPU primitive; '6d' path also omitted (config
# default is 'quat').


if __name__ == "__main__":
    key = jax.random.PRNGKey(0)
    k1, k2, k3, k4, k5 = jax.random.split(key, 5)

    # Typical small-N regime (a handful of views): pure-XLA fast path.
    N = 8
    x_quat = jax.random.normal(k1, (N, 7), dtype=jnp.float32)
    x_uncal = jax.random.normal(k2, (N, 12), dtype=jnp.float32)
    pts_3D = jax.random.normal(k3, (2, 3, 16), dtype=jnp.float32)

    # Larger, non-128-multiple N: exercises the Pallas kernels (2 parallel
    # grid steps, ragged last block, no wrapper pad/slice).
    N_big = 4500
    x_quat_big = jax.random.normal(k4, (N_big, 7), dtype=jnp.float32)
    x_uncal_big = jax.random.normal(k5, (N_big, 12), dtype=jnp.float32)

    # small-N (pure-JAX fallback) path
    out_quat = extract_view_outputs_calibrated_quat(x_quat)["Ps_norm"]
    out_fro = extract_view_outputs_uncalibrated(x_uncal, "Frobenius")["Ps_norm"]
    out_none = extract_view_outputs_uncalibrated(x_uncal, None)["Ps_norm"]
    out_pts = extract_scenepoint_outputs(pts_3D)["pts3D"]

    # large-N (Pallas) path
    out_quat_big = extract_view_outputs_calibrated_quat(x_quat_big)["Ps_norm"]
    out_fro_big = extract_view_outputs_uncalibrated(
        x_uncal_big, "Frobenius")["Ps_norm"]
    out_chi_big = extract_view_outputs_uncalibrated(
        x_uncal_big, "Chirality")["Ps_norm"]
    out_dchi_big = extract_view_outputs_uncalibrated(
        x_uncal_big, "Differentiable Chirality")["Ps_norm"]

    jax.block_until_ready((out_quat, out_fro, out_none, out_pts,
                           out_quat_big, out_fro_big, out_chi_big,
                           out_dchi_big))

    # Shape checks
    assert out_quat.shape == (N, 3, 4)
    assert out_quat_big.shape == (N_big, 3, 4)
    assert out_fro_big.shape == (N_big, 3, 4)
    assert out_pts.shape == (2, 4, 16)

    # Correctness vs pure-JAX references (the Pallas path is the genuine check
    # at N_big; the small-N path is the reference itself by construction).
    assert jnp.allclose(out_quat, _quat_views_jax(x_quat), rtol=1e-5, atol=1e-5)
    assert jnp.allclose(out_quat_big, _quat_views_jax(x_quat_big),
                        rtol=1e-5, atol=1e-5)
    assert jnp.allclose(out_none, x_uncal.reshape(-1, 3, 4))
    # rsqrt-based normalization paths: slightly looser tolerance.
    assert jnp.allclose(out_fro, _uncalib_views_jax(x_uncal, "Frobenius"),
                        rtol=1e-4, atol=1e-5)
    assert jnp.allclose(out_fro_big,
                        _uncalib_views_jax(x_uncal_big, "Frobenius"),
                        rtol=1e-4, atol=1e-5)
    assert jnp.allclose(out_chi_big,
                        _uncalib_views_jax(x_uncal_big, "Chirality"),
                        rtol=1e-4, atol=1e-5)
    assert jnp.allclose(out_dchi_big,
                        _uncalib_views_jax(x_uncal_big,
                                           "Differentiable Chirality"),
                        rtol=1e-4, atol=1e-5)

    print("KERNEL_OK")
</pallas_src>

<mosaic_0001>
module attributes {stable_mosaic.version = 11 : i64} {
  func.func @_quat_view_kernel(%arg0: i32, %arg1: memref<7x2304xf32, #tpu.memory_space<vmem>>, %arg2: memref<12x2304xf32, #tpu.memory_space<vmem>>) attributes {dimension_semantics = [#tpu.dimension_semantics<parallel>], iteration_bounds = array<i64: 2>, scalar_prefetch = 0 : i64, scratch_operands = 0 : i64, tpu.core_type = #tpu.core_type<tc>, window_params = [{transform_indices = @transform_0, window_bounds = array<i64: 7, 2304>}, {transform_indices = @transform_1, window_bounds = array<i64: 12, 2304>}]} {
    %c0 = arith.constant 0 : index
    %c0_0 = arith.constant 0 : index
    %0 = vector.load %arg1[%c0, %c0_0] : memref<7x2304xf32, #tpu.memory_space<vmem>>, vector<1x2304xf32>
    %c1 = arith.constant 1 : index
    %c0_1 = arith.constant 0 : index
    %1 = vector.load %arg1[%c1, %c0_1] : memref<7x2304xf32, #tpu.memory_space<vmem>>, vector<1x2304xf32>
    %c2 = arith.constant 2 : index
    %c0_2 = arith.constant 0 : index
    %2 = vector.load %arg1[%c2, %c0_2] : memref<7x2304xf32, #tpu.memory_space<vmem>>, vector<1x2304xf32>
    %c3 = arith.constant 3 : index
    %c0_3 = arith.constant 0 : index
    %3 = vector.load %arg1[%c3, %c0_3] : memref<7x2304xf32, #tpu.memory_space<vmem>>, vector<1x2304xf32>
    %4 = arith.mulf %0, %0 : vector<1x2304xf32>
    %5 = arith.mulf %1, %1 : vector<1x2304xf32>
    %6 = arith.addf %4, %5 : vector<1x2304xf32>
    %7 = arith.mulf %2, %2 : vector<1x2304xf32>
    %8 = arith.addf %6, %7 : vector<1x2304xf32>
    %9 = arith.mulf %3, %3 : vector<1x2304xf32>
    %10 = arith.addf %8, %9 : vector<1x2304xf32>
    %11 = tpu.reciprocal %10 : vector<1x2304xf32> -> vector<1x2304xf32>
    %cst = arith.constant 2.000000e+00 : f32
    %12 = vector.broadcast %cst : f32 to vector<1x2304xf32>
    %13 = arith.mulf %12, %11 : vector<1x2304xf32>
    %c4 = arith.constant 4 : index
    %c0_4 = arith.constant 0 : index
    %14 = vector.load %arg1[%c4, %c0_4] : memref<7x2304xf32, #tpu.memory_space<vmem>>, vector<1x2304xf32>
    %c3_5 = arith.constant 3 : index
    %c0_6 = arith.constant 0 : index
    %15 = vector.load %arg2[%c3_5, %c0_6] : memref<12x2304xf32, #tpu.memory_space<vmem>>, vector<1x2304xf32>
    tpu.vector_store %arg2[%c3_5, %c0_6], %14 {strides = array<i32>} : memref<12x2304xf32, #tpu.memory_space<vmem>>, vector<1x2304xf32>,
    %c5 = arith.constant 5 : index
    %c0_7 = arith.constant 0 : index
    %16 = vector.load %arg1[%c5, %c0_7] : memref<7x2304xf32, #tpu.memory_space<vmem>>, vector<1x2304xf32>
    %c7 = arith.constant 7 : index
    %c0_8 = arith.constant 0 : index
    %17 = vector.load %arg2[%c7, %c0_8] : memref<12x2304xf32, #tpu.memory_space<vmem>>, vector<1x2304xf32>
    tpu.vector_store %arg2[%c7, %c0_8], %16 {strides = array<i32>} : memref<12x2304xf32, #tpu.memory_space<vmem>>, vector<1x2304xf32>,
    %c6 = arith.constant 6 : index
    %c0_9 = arith.constant 0 : index
    %18 = vector.load %arg1[%c6, %c0_9] : memref<7x2304xf32, #tpu.memory_space<vmem>>, vector<1x2304xf32>
    %c11 = arith.constant 11 : index
    %c0_10 = arith.constant 0 : index
    %19 = vector.load %arg2[%c11, %c0_10] : memref<12x2304xf32, #tpu.memory_space<vmem>>, vector<1x2304xf32>
    tpu.vector_store %arg2[%c11, %c0_10], %18 {strides = array<i32>} : memref<12x2304xf32, #tpu.memory_space<vmem>>, vector<1x2304xf32>,
    %20 = arith.mulf %13, %1 : vector<1x2304xf32>
    %21 = arith.mulf %13, %2 : vector<1x2304xf32>
    %22 = arith.mulf %13, %3 : vector<1x2304xf32>
    %23 = arith.mulf %21, %2 : vector<1x2304xf32>
    %24 = arith.mulf %22, %3 : vector<1x2304xf32>
    %25 = arith.addf %23, %24 : vector<1x2304xf32>
    %cst_11 = arith.constant 1.000000e+00 : f32
    %26 = vector.broadcast %cst_11 : f32 to vector<1x2304xf32>
    %27 = arith.subf %26, %25 : vector<1x2304xf32>
    %c0_12 = arith.constant 0 : index
    %c0_13 = arith.constant 0 : index
    %28 = vector.load %arg2[%c0_12, %c0_13] : memref<12x2304xf32, #tpu.memory_space<vmem>>, vector<1x2304xf32>
    tpu.vector_store %arg2[%c0_12, %c0_13], %27 {strides = array<i32>} : memref<12x2304xf32, #tpu.memory_space<vmem>>, vector<1x2304xf32>,
    %29 = arith.mulf %20, %1 : vector<1x2304xf32>
    %30 = arith.mulf %22, %3 : vector<1x2304xf32>
    %31 = arith.addf %29, %30 : vector<1x2304xf32>
    %cst_14 = arith.constant 1.000000e+00 : f32
    %32 = vector.broadcast %cst_14 : f32 to vector<1x2304xf32>
    %33 = arith.subf %32, %31 : vector<1x2304xf32>
    %c5_15 = arith.constant 5 : index
    %c0_16 = arith.constant 0 : index
    %34 = vector.load %arg2[%c5_15, %c0_16] : memref<12x2304xf32, #tpu.memory_space<vmem>>, vector<1x2304xf32>
    tpu.vector_store %arg2[%c5_15, %c0_16], %33 {strides = array<i32>} : memref<12x2304xf32, #tpu.memory_space<vmem>>, vector<1x2304xf32>,
    %35 = arith.mulf %20, %1 : vector<1x2304xf32>
    %36 = arith.mulf %21, %2 : vector<1x2304xf32>
    %37 = arith.addf %35, %36 : vector<1x2304xf32>
    %cst_17 = arith.constant 1.000000e+00 : f32
    %38 = vector.broadcast %cst_17 : f32 to vector<1x2304xf32>
    %39 = arith.subf %38, %37 : vector<1x2304xf32>
    %c10 = arith.constant 10 : index
    %c0_18 = arith.constant 0 : index
    %40 = vector.load %arg2[%c10, %c0_18] : memref<12x2304xf32, #tpu.memory_space<vmem>>, vector<1x2304xf32>
    tpu.vector_store %arg2[%c10, %c0_18], %39 {strides = array<i32>} : memref<12x2304xf32, #tpu.memory_space<vmem>>, vector<1x2304xf32>,
    %41 = arith.mulf %20, %2 : vector<1x2304xf32>
    %42 = arith.mulf %22, %0 : vector<1x2304xf32>
    %43 = arith.subf %41, %42 : vector<1x2304xf32>
    %c1_19 = arith.constant 1 : index
    %c0_20 = arith.constant 0 : index
    %44 = vector.load %arg2[%c1_19, %c0_20] : memref<12x2304xf32, #tpu.memory_space<vmem>>, vector<1x2304xf32>
    tpu.vector_store %arg2[%c1_19, %c0_20], %43 {strides = array<i32>} : memref<12x2304xf32, #tpu.memory_space<vmem>>, vector<1x2304xf32>,
    %45 = arith.mulf %20, %2 : vector<1x2304xf32>
    %46 = arith.mulf %22, %0 : vector<1x2304xf32>
    %47 = arith.addf %45, %46 : vector<1x2304xf32>
    %c4_21 = arith.constant 4 : index
    %c0_22 = arith.constant 0 : index
    %48 = vector.load %arg2[%c4_21, %c0_22] : memref<12x2304xf32, #tpu.memory_space<vmem>>, vector<1x2304xf32>
    tpu.vector_store %arg2[%c4_21, %c0_22], %47 {strides = array<i32>} : memref<12x2304xf32, #tpu.memory_space<vmem>>, vector<1x2304xf32>,
    %49 = arith.mulf %20, %3 : vector<1x2304xf32>
    %50 = arith.mulf %21, %0 : vector<1x2304xf32>
    %51 = arith.addf %49, %50 : vector<1x2304xf32>
    %c2_23 = arith.constant 2 : index
    %c0_24 = arith.constant 0 : index
    %52 = vector.load %arg2[%c2_23, %c0_24] : memref<12x2304xf32, #tpu.memory_space<vmem>>, vector<1x2304xf32>
    tpu.vector_store %arg2[%c2_23, %c0_24], %51 {strides = array<i32>} : memref<12x2304xf32, #tpu.memory_space<vmem>>, vector<1x2304xf32>,
    %53 = arith.mulf %20, %3 : vector<1x2304xf32>
    %54 = arith.mulf %21, %0 : vector<1x2304xf32>
    %55 = arith.subf %53, %54 : vector<1x2304xf32>
    %c8 = arith.constant 8 : index
    %c0_25 = arith.constant 0 : index
    %56 = vector.load %arg2[%c8, %c0_25] : memref<12x2304xf32, #tpu.memory_space<vmem>>, vector<1x2304xf32>
    tpu.vector_store %arg2[%c8, %c0_25], %55 {strides = array<i32>} : memref<12x2304xf32, #tpu.memory_space<vmem>>, vector<1x2304xf32>,
    %57 = arith.mulf %21, %3 : vector<1x2304xf32>
    %58 = arith.mulf %20, %0 : vector<1x2304xf32>
    %59 = arith.subf %57, %58 : vector<1x2304xf32>
    %c6_26 = arith.constant 6 : index
    %c0_27 = arith.constant 0 : index
    %60 = vector.load %arg2[%c6_26, %c0_27] : memref<12x2304xf32, #tpu.memory_space<vmem>>, vector<1x2304xf32>
    tpu.vector_store %arg2[%c6_26, %c0_27], %59 {strides = array<i32>} : memref<12x2304xf32, #tpu.memory_space<vmem>>, vector<1x2304xf32>,
    %61 = arith.mulf %21, %3 : vector<1x2304xf32>
    %62 = arith.mulf %20, %0 : vector<1x2304xf32>
    %63 = arith.addf %61, %62 : vector<1x2304xf32>
    %c9 = arith.constant 9 : index
    %c0_28 = arith.constant 0 : index
    %64 = vector.load %arg2[%c9, %c0_28] : memref<12x2304xf32, #tpu.memory_space<vmem>>, vector<1x2304xf32>
    tpu.vector_store %arg2[%c9, %c0_28], %63 {strides = array<i32>} : memref<12x2304xf32, #tpu.memory_space<vmem>>, vector<1x2304xf32>,
    return
  }
  func.func @transform_0(%arg0: i32) -> (i32, i32) {
    %c0_i32 = arith.constant 0 : i32
    %c0_i32_0 = arith.constant 0 : i32
    return %c0_i32, %arg0 : i32, i32
  }
  func.func @transform_1(%arg0: i32) -> (i32, i32) {
    %c0_i32 = arith.constant 0 : i32
    %c0_i32_0 = arith.constant 0 : i32
    return %c0_i32, %arg0 : i32, i32
  }
}

</mosaic_0001>

<llo_original>
// kernel: tpu_custom_call.1
$region0: #{tpu_custom_call.1}
  #allocation0 [shape = 'u32[]', space=smem, size = 0x4, offset = 0x4, fixed_abs, tag = 'smem constant byte address 0x4 - core index']
  #allocation1 [shape = 'u32[144,128]{1,0:T(1,128)}', space=vmem, size = 0x12000, scoped, tag = 'internal scratch']
  %s0 = inlined_call_operand.hbm [shape: f32[7,4500], index: 0, kind: input, shape index: {}]
  %s1 = inlined_call_operand.hbm [shape: f32[12,4500], index: 1, kind: output, shape index: {}]
  %s2 = sld [smem:[#allocation0]]
  $region41: #{tpu_custom_call.1} parent=0
    _
  %s4 = ssub.s32 1, %s2
  %s5 = scalar_select 0, %s4, %s2
  $region1: #{tpu_custom_call.1} parent=0
    #allocation2 [shape = 'u8[147456]{0}', space=vmem, size = 0x24000, scoped, tag = 'input window, operand 0']
    #allocation3 [shape = 's32[2]{0}', space=sflag, size = 0x8, scoped, tag = 'scoped memory for tpu_custom_call.1']
    #allocation4 [shape = 's32[2]{0}', space=sflag, size = 0x8, scoped, tag = 'scoped memory for tpu_custom_call.1']
    #allocation5 [shape = 'u8[294912]{0}', space=vmem, size = 0x48000, scoped, tag = 'output window, operand 0']
    %6 = vsyncpa [#allocation3], 0
    %s7 = scalar_lea.sflag [#allocation3], 1
    %8 = vsyncpa %s7, 0
    %9 = vsyncpa [#allocation4], 0
    %s10 = scalar_lea.sflag [#allocation4], 1
    %11 = vsyncpa %s10, 0
    loop: start=0, step=1, limit=4
    $region2: #{tpu_custom_call.1} parent=1 // loop_pre_header
      _
    $region3: #{tpu_custom_call.1} parent=1 // loop_header
      %s13 = sphi 0, %s17
      %p14 = scmp.ge.s32.totalorder %s13, 4
      %s23 = sphi 0, %s25
      %s26 = sphi 0, %s23
      %s27 = sphi 0, %s26
      %s43 = sphi 0, %s27
      %s49 = sphi 0, %s51
      %s52 = sphi 0, %s49
      %s53 = sphi 0, %s52
      %s69 = sphi 0, %s53
    $region4: #{tpu_custom_call.1} parent=1 // loop_header_branch
      %16 = sbr.rel (%p14) target = $region8
    $region5: #{tpu_custom_call.1} parent=1 // loop_body
      %s18 = ssub.s32 %s13, 1
      %s19 = ssub.s32 %s13, 2
      %s20 = sadd.s32 %s13, 1
      %s21 = ssub.s32 %s13, %s20
      %p22 = scmp.eq.s32.totalorder %s21, 0
      %s24 = sadd.s32 %s23, 1
      %s25 = scalar_select %p22, %s23, %s24
      %p28 = pneg %p22
      %p29 = scmp.eq.s32.totalorder %s13, 1
      %p30 = por %p28, %p29
      %p31 = scmp.ne.s32.totalorder %s23, %s26
      %p32 = scmp.eq.s32.totalorder %s13, 0
      %p33 = por %p31, %p32
      %p34 = scmp.ne.s32.totalorder %s23, %s26
      %p35 = scmp.eq.s32.totalorder %s18, 1
      %p36 = por %p34, %p35
      %p37 = scmp.ne.s32.totalorder %s26, %s27
      %p38 = scmp.eq.s32.totalorder %s18, 0
      %p39 = por %p37, %p38
      %p40 = scmp.ne.s32.totalorder %s26, %s27
      %p41 = scmp.eq.s32.totalorder %s19, 1
      %p42 = por %p40, %p41
      %p44 = scmp.ne.s32.totalorder %s27, %s43
      %p45 = scmp.eq.s32.totalorder %s19, 0
      %p46 = por %p44, %p45
      %s47 = ssub.s32 %s13, %s20
      %p48 = scmp.eq.s32.totalorder %s47, 0
      %s50 = sadd.s32 %s49, 1
      %s51 = scalar_select %p48, %s49, %s50
      %p54 = pneg %p48
      %p55 = scmp.eq.s32.totalorder %s13, 1
      %p56 = por %p54, %p55
      %p57 = scmp.ne.s32.totalorder %s49, %s52
      %p58 = scmp.eq.s32.totalorder %s13, 0
      %p59 = por %p57, %p58
      %p60 = scmp.ne.s32.totalorder %s49, %s52
      %p61 = scmp.eq.s32.totalorder %s18, 1
      %p62 = por %p60, %p61
      %p63 = scmp.ne.s32.totalorder %s52, %s53
      %p64 = scmp.eq.s32.totalorder %s18, 0
      %p65 = por %p63, %p64
      %p66 = scmp.ne.s32.totalorder %s52, %s53
      %p67 = scmp.eq.s32.totalorder %s19, 1
      %p68 = por %p66, %p67
      %p70 = scmp.ne.s32.totalorder %s53, %s69
      %p71 = scmp.eq.s32.totalorder %s19, 0
      %p72 = por %p70, %p71
      %p73 = scmp.le.s32.totalorder 1, %s13
      %p74 = scmp.lt.s32.totalorder %s13, 3
      %p75 = pnand %p73, %p74
      %p76 = pneg %p75
      // Predicated region
      $region9: #{tpu_custom_call.1} parent=5 // pred_check
        _
      $region10: #{tpu_custom_call.1} parent=5 // pred_check_branch
        %78 = sbr.rel (%p75) target = $region12
      $region11: #{tpu_custom_call.1} parent=5 // pred_region
        %s79 = ssub.s32 %s13, 1
      $region12: #{tpu_custom_call.1} parent=5 // pred_fallthru
        _
      %p80 = scmp.lt.s32.totalorder %s13, 2
      // Predicated region
      $region13: #{tpu_custom_call.1} parent=5 // pred_check
        %p81 = pneg %p80
      $region14: #{tpu_custom_call.1} parent=5 // pred_check_branch
        %83 = sbr.rel (%p81) target = $region16
      $region15: #{tpu_custom_call.1} parent=5 // pred_region
        // Predicated region
        $region17: #{tpu_custom_call.1} parent=15 // pred_check
          %p84 = pneg %p33
        $region18: #{tpu_custom_call.1} parent=15 // pred_check_branch
          %86 = sbr.rel (%p84) target = $region20
        $region19: #{tpu_custom_call.1} parent=15 // pred_region
          %s87 = sand.u32 %s23, 1
          %s88 = scalar_lea.sflag [#allocation3], %s87
          %s89 = sand.u32 %s23, 1
          %s90 = smul.addr %s89, 144
          %s91 = scalar_lea.vmem [#allocation2], %s90
          %s92 = smul.u32 18, %s13
          %s94 = ssub.s32 2304, 2304
          %95 = vsyncadd %s88, %s94
          %s96 = smul.addr %s92, 128
          %s97 = scalar_lea.hbm %s0, %s96
          %s99 = sshll.u32 %s91, 4
          %s100 = int_to_ptr.vmem [resolvable:$true] %s99
          %102 = dma.hbm_to_vmem [thread:$0]  %s97, 2304, %s100, %s88
        $region20: #{tpu_custom_call.1} parent=15 // pred_fallthru
          _
      $region16: #{tpu_custom_call.1} parent=5 // pred_fallthru
        _
      %p103 = scmp.le.s32.totalorder 1, %s13
      %p104 = scmp.lt.s32.totalorder %s13, 3
      %p105 = pnand %p103, %p104
      %p106 = pneg %p105
      // Predicated region
      $region21: #{tpu_custom_call.1} parent=5 // pred_check
        _
      $region22: #{tpu_custom_call.1} parent=5 // pred_check_branch
        %108 = sbr.rel (%p105) target = $region24
      $region23: #{tpu_custom_call.1} parent=5 // pred_region
        %s109 = ssub.s32 %s13, 1
        %s110 = sand.u32 %s26, 1
        %s111 = scalar_lea.sflag [#allocation3], %s110
        %s112 = sand.u32 %s26, 1
        %s113 = smul.addr %s112, 144
        %s114 = scalar_lea.vmem [#allocation2], %s113
        // Predicated region
        $region25: #{tpu_custom_call.1} parent=23 // pred_check
          %p115 = pneg %p39
        $region26: #{tpu_custom_call.1} parent=23 // pred_check_branch
          %117 = sbr.rel (%p115) target = $region28
        $region27: #{tpu_custom_call.1} parent=23 // pred_region
          %118 = dma.done %s111, 2304
        $region28: #{tpu_custom_call.1} parent=23 // pred_fallthru
          _
        %s119 = sand.u32 %s26, 1
        %s120 = scalar_lea.sflag [#allocation3], %s119
        %s121 = sand.u32 %s26, 1
        %s122 = smul.addr %s121, 144
        %s123 = scalar_lea.vmem [#allocation2], %s122
        %p124 = pneg %p39
        %p125 = pneg %p36
        %p126 = pneg %p65
        %p127 = pneg %p62
        %s128 = sand.u32 %s52, 1
        %s129 = scalar_lea.sflag [#allocation4], %s128
        %s130 = sand.u32 %s52, 1
        %s131 = smul.addr %s130, 288
        %s132 = scalar_lea.vmem [#allocation5], %s131
        %s133 = smul.u32 18, %s18
        %s134 = smul.u32 18, %s18
        %v135 = vld [vmem:[%s114] ss:$8 sm:$0xf]
        %v136 = vld [vmem:[%s114] ss:$8 sm:$0xf0]
        %v137 = vor.u32 %v135, %v136
        %s138 = scalar_lea.vmem %s114, 64 [#allocation2]
        %v139 = vld [vmem:[%s138] ss:$8 sm:$0xf]
        %v140 = vld [vmem:[%s138] ss:$8 sm:$0xf0]
        %v141 = vor.u32 %v139, %v140
        %s142 = scalar_lea.vmem %s114, 128 [#allocation2]
        %v143 = vld [vmem:[%s142] ss:$8 sm:$0x3]
        %s144 = scalar_lea.vmem %s114, 1 [#allocation2]
        %v145 = vld [vmem:[%s144] ss:$8 sm:$0xf]
        %v146 = vld [vmem:[%s144] ss:$8 sm:$0xf0]
        %v147 = vor.u32 %v145, %v146
        %s148 = scalar_lea.vmem %s114, 65 [#allocation2]
        %v149 = vld [vmem:[%s148] ss:$8 sm:$0xf]
        %v150 = vld [vmem:[%s148] ss:$8 sm:$0xf0]
        %v151 = vor.u32 %v149, %v150
        %s152 = scalar_lea.vmem %s114, 129 [#allocation2]
        %v153 = vld [vmem:[%s152] ss:$8 sm:$0x3]
        %s154 = scalar_lea.vmem %s114, 2 [#allocation2]
        %v155 = vld [vmem:[%s154] ss:$8 sm:$0xf]
        %v156 = vld [vmem:[%s154] ss:$8 sm:$0xf0]
        %v157 = vor.u32 %v155, %v156
        %s158 = scalar_lea.vmem %s114, 66 [#allocation2]
        %v159 = vld [vmem:[%s158] ss:$8 sm:$0xf]
        %v160 = vld [vmem:[%s158] ss:$8 sm:$0xf0]
        %v161 = vor.u32 %v159, %v160
        %s162 = scalar_lea.vmem %s114, 130 [#allocation2]
        %v163 = vld [vmem:[%s162] ss:$8 sm:$0x3]
        %s164 = scalar_lea.vmem %s114, 3 [#allocation2]
        %v165 = vld [vmem:[%s164] ss:$8 sm:$0xf]
        %v166 = vld [vmem:[%s164] ss:$8 sm:$0xf0]
        %v167 = vor.u32 %v165, %v166
        %s168 = scalar_lea.vmem %s114, 67 [#allocation2]
        %v169 = vld [vmem:[%s168] ss:$8 sm:$0xf]
        %v170 = vld [vmem:[%s168] ss:$8 sm:$0xf0]
        %v171 = vor.u32 %v169, %v170
        %s172 = scalar_lea.vmem %s114, 131 [#allocation2]
        %v173 = vld [vmem:[%s172] ss:$8 sm:$0x3]
        %v174 = vmul.f32 %v137, %v137
        %v175 = vmul.f32 %v141, %v141
        %v176 = vmul.f32 %v143, %v143
        %v177 = vmul.f32 %v147, %v147
        %v178 = vmul.f32 %v151, %v151
        %v179 = vmul.f32 %v153, %v153
        %v180 = vadd.f32 %v174, %v177
        %v181 = vadd.f32 %v175, %v178
        %v182 = vadd.f32 %v176, %v179
        %v183 = vmul.f32 %v157, %v157
        %v184 = vmul.f32 %v161, %v161
        %v185 = vmul.f32 %v163, %v163
        %v186 = vadd.f32 %v180, %v183
        %v187 = vadd.f32 %v181, %v184
        %v188 = vadd.f32 %v182, %v185
        %v189 = vmul.f32 %v167, %v167
        %v190 = vmul.f32 %v171, %v171
        %v191 = vmul.f32 %v173, %v173
        %v192 = vadd.f32 %v186, %v189
        %v193 = vadd.f32 %v187, %v190
        %v194 = vadd.f32 %v188, %v191
        %v195 = vrcp.pop %v192
        %v196 = vrcp.pop %v193
        %v197 = vrcp.pop %v194
        %v198 = vmul.f32 %v195, 2.0
        %v199 = vmul.f32 %v196, 2.0
        %v200 = vmul.f32 %v197, 2.0
        %s201 = scalar_lea.vmem %s114, 4 [#allocation2]
        %v202 = vld [vmem:[%s201] ss:$8 sm:$0xf]
        %v203 = vld [vmem:[%s201] ss:$8 sm:$0xf0]
        %v204 = vor.u32 %v202, %v203
        %s205 = scalar_lea.vmem %s114, 68 [#allocation2]
        %v206 = vld [vmem:[%s205] ss:$8 sm:$0xf]
        %v207 = vld [vmem:[%s205] ss:$8 sm:$0xf0]
        %v208 = vor.u32 %v206, %v207
        %s209 = scalar_lea.vmem %s114, 132 [#allocation2]
        %v210 = vld [vmem:[%s209] ss:$8 sm:$0x3]
        %s211 = scalar_lea.vmem %s132, 3 [#allocation5]
        %212 = vst [vmem:[%s211] ss:$8 sm:$0xf] %v204
        %213 = vst [vmem:[%s211] ss:$8 sm:$0xf0] %v204
        %s214 = scalar_lea.vmem %s132, 67 [#allocation5]
        %215 = vst [vmem:[%s214] ss:$8 sm:$0xf] %v208
        %216 = vst [vmem:[%s214] ss:$8 sm:$0xf0] %v208
        %v217 = vlaneseq
        %vm218 = vcmp.ge.s32.totalorder %v217, 0
        %vm219 = vcmp.lt.s32.totalorder %v217, 256
        %vm220 = vmand %vm218, %vm219
        %s221 = scalar_lea.vmem %s132, 131 [#allocation5]
        %222 = vst.msk [vmem:[%s221] ss:$8 sm:$0x3] %vm220, %v210
        %223 = vst.msk [vmem:[%s221] ss:$8 sm:$0x0] %vm220, %v210
        %s224 = scalar_lea.vmem %s114, 5 [#allocation2]
        %v225 = vld [vmem:[%s224] ss:$8 sm:$0xf]
        %v226 = vld [vmem:[%s224] ss:$8 sm:$0xf0]
        %v227 = vor.u32 %v225, %v226
        %s228 = scalar_lea.vmem %s114, 69 [#allocation2]
        %v229 = vld [vmem:[%s228] ss:$8 sm:$0xf]
        %v230 = vld [vmem:[%s228] ss:$8 sm:$0xf0]
        %v231 = vor.u32 %v229, %v230
        %s232 = scalar_lea.vmem %s114, 133 [#allocation2]
        %v233 = vld [vmem:[%s232] ss:$8 sm:$0x3]
        %s234 = scalar_lea.vmem %s132, 7 [#allocation5]
        %235 = vst [vmem:[%s234] ss:$8 sm:$0xf] %v227
        %236 = vst [vmem:[%s234] ss:$8 sm:$0xf0] %v227
        %s237 = scalar_lea.vmem %s132, 71 [#allocation5]
        %238 = vst [vmem:[%s237] ss:$8 sm:$0xf] %v231
        %239 = vst [vmem:[%s237] ss:$8 sm:$0xf0] %v231
        %s240 = scalar_lea.vmem %s132, 135 [#allocation5]
        %241 = vst.msk [vmem:[%s240] ss:$8 sm:$0x3] %vm220, %v233
        %242 = vst.msk [vmem:[%s240] ss:$8 sm:$0x0] %vm220, %v233
        %s243 = scalar_lea.vmem %s114, 6 [#allocation2]
        %v244 = vld [vmem:[%s243] ss:$8 sm:$0xf]
        %v245 = vld [vmem:[%s243] ss:$8 sm:$0xf0]
        %v246 = vor.u32 %v244, %v245
        %s247 = scalar_lea.vmem %s114, 70 [#allocation2]
        %v248 = vld [vmem:[%s247] ss:$8 sm:$0xf]
        %v249 = vld [vmem:[%s247] ss:$8 sm:$0xf0]
        %v250 = vor.u32 %v248, %v249
        %s251 = scalar_lea.vmem %s114, 134 [#allocation2]
        %v252 = vld [vmem:[%s251] ss:$8 sm:$0x3]
        %s253 = scalar_lea.vmem %s132, 147 [#allocation5]
        %254 = vst [vmem:[%s253] ss:$8 sm:$0xf] %v246
        %255 = vst [vmem:[%s253] ss:$8 sm:$0xf0] %v246
        %s256 = scalar_lea.vmem %s132, 211 [#allocation5]
        %257 = vst [vmem:[%s256] ss:$8 sm:$0xf] %v250
        %258 = vst [vmem:[%s256] ss:$8 sm:$0xf0] %v250
        %s259 = scalar_lea.vmem %s132, 275 [#allocation5]
        %260 = vst.msk [vmem:[%s259] ss:$8 sm:$0x3] %vm220, %v252
        %261 = vst.msk [vmem:[%s259] ss:$8 sm:$0x0] %vm220, %v252
        %v262 = vmul.f32 %v198, %v147
        %v263 = vmul.f32 %v199, %v151
        %v264 = vmul.f32 %v200, %v153
        %v265 = vmul.f32 %v198, %v157
        %v266 = vmul.f32 %v199, %v161
        %v267 = vmul.f32 %v200, %v163
        %v268 = vmul.f32 %v198, %v167
        %v269 = vmul.f32 %v199, %v171
        %v270 = vmul.f32 %v200, %v173
        %v271 = vmul.f32 %v265, %v157
        %v272 = vmul.f32 %v266, %v161
        %v273 = vmul.f32 %v267, %v163
        %v274 = vmul.f32 %v268, %v167
        %v275 = vmul.f32 %v269, %v171
        %v276 = vmul.f32 %v270, %v173
        %v277 = vadd.f32 %v271, %v274
        %v278 = vadd.f32 %v272, %v275
        %v279 = vadd.f32 %v273, %v276
        %v280 = vsub.f32 1.0, %v277
        %v281 = vsub.f32 1.0, %v278
        %v282 = vsub.f32 1.0, %v279
        %283 = vst [vmem:[%s132] ss:$8 sm:$0xf] %v280
        %284 = vst [vmem:[%s132] ss:$8 sm:$0xf0] %v280
        %s285 = scalar_lea.vmem %s132, 64 [#allocation5]
        %286 = vst [vmem:[%s285] ss:$8 sm:$0xf] %v281
        %287 = vst [vmem:[%s285] ss:$8 sm:$0xf0] %v281
        %s288 = scalar_lea.vmem %s132, 128 [#allocation5]
        %289 = vst.msk [vmem:[%s288] ss:$8 sm:$0x3] %vm220, %v282
        %290 = vst.msk [vmem:[%s288] ss:$8 sm:$0x0] %vm220, %v282
        %v291 = vmul.f32 %v262, %v147
        %v292 = vmul.f32 %v263, %v151
        %v293 = vmul.f32 %v264, %v153
        %v294 = vadd.f32 %v291, %v274
        %v295 = vadd.f32 %v292, %v275
        %v296 = vadd.f32 %v293, %v276
        %v297 = vsub.f32 1.0, %v294
        %v298 = vsub.f32 1.0, %v295
        %v299 = vsub.f32 1.0, %v296
        %s300 = scalar_lea.vmem %s132, 5 [#allocation5]
        %301 = vst [vmem:[%s300] ss:$8 sm:$0xf] %v297
        %302 = vst [vmem:[%s300] ss:$8 sm:$0xf0] %v297
        %s303 = scalar_lea.vmem %s132, 69 [#allocation5]
        %304 = vst [vmem:[%s303] ss:$8 sm:$0xf] %v298
        %305 = vst [vmem:[%s303] ss:$8 sm:$0xf0] %v298
        %s306 = scalar_lea.vmem %s132, 133 [#allocation5]
        %307 = vst.msk [vmem:[%s306] ss:$8 sm:$0x3] %vm220, %v299
        %308 = vst.msk [vmem:[%s306] ss:$8 sm:$0x0] %vm220, %v299
        %v309 = vadd.f32 %v291, %v271
        %v310 = vadd.f32 %v292, %v272
        %v311 = vadd.f32 %v293, %v273
        %v312 = vsub.f32 1.0, %v309
        %v313 = vsub.f32 1.0, %v310
        %v314 = vsub.f32 1.0, %v311
        %s315 = scalar_lea.vmem %s132, 146 [#allocation5]
        %316 = vst [vmem:[%s315] ss:$8 sm:$0xf] %v312
        %317 = vst [vmem:[%s315] ss:$8 sm:$0xf0] %v312
        %s318 = scalar_lea.vmem %s132, 210 [#allocation5]
        %319 = vst [vmem:[%s318] ss:$8 sm:$0xf] %v313
        %320 = vst [vmem:[%s318] ss:$8 sm:$0xf0] %v313
        %s321 = scalar_lea.vmem %s132, 274 [#allocation5]
        %322 = vst.msk [vmem:[%s321] ss:$8 sm:$0x3] %vm220, %v314
        %323 = vst.msk [vmem:[%s321] ss:$8 sm:$0x0] %vm220, %v314
        %v324 = vmul.f32 %v262, %v157
        %v325 = vmul.f32 %v263, %v161
        %v326 = vmul.f32 %v264, %v163
        %v327 = vmul.f32 %v268, %v137
        %v328 = vmul.f32 %v269, %v141
        %v329 = vmul.f32 %v270, %v143
        %v330 = vsub.f32 %v324, %v327
        %v331 = vsub.f32 %v325, %v328
        %v332 = vsub.f32 %v326, %v329
        %s333 = scalar_lea.vmem %s132, 1 [#allocation5]
        %334 = vst [vmem:[%s333] ss:$8 sm:$0xf] %v330
        %335 = vst [vmem:[%s333] ss:$8 sm:$0xf0] %v330
        %s336 = scalar_lea.vmem %s132, 65 [#allocation5]
        %337 = vst [vmem:[%s336] ss:$8 sm:$0xf] %v331
        %338 = vst [vmem:[%s336] ss:$8 sm:$0xf0] %v331
        %s339 = scalar_lea.vmem %s132, 129 [#allocation5]
        %340 = vst.msk [vmem:[%s339] ss:$8 sm:$0x3] %vm220, %v332
        %341 = vst.msk [vmem:[%s339] ss:$8 sm:$0x0] %vm220, %v332
        %v342 = vadd.f32 %v324, %v327
        %v343 = vadd.f32 %v325, %v328
        %v344 = vadd.f32 %v326, %v329
        %s345 = scalar_lea.vmem %s132, 4 [#allocation5]
        %346 = vst [vmem:[%s345] ss:$8 sm:$0xf] %v342
        %347 = vst [vmem:[%s345] ss:$8 sm:$0xf0] %v342
        %s348 = scalar_lea.vmem %s132, 68 [#allocation5]
        %349 = vst [vmem:[%s348] ss:$8 sm:$0xf] %v343
        %350 = vst [vmem:[%s348] ss:$8 sm:$0xf0] %v343
        %s351 = scalar_lea.vmem %s132, 132 [#allocation5]
        %352 = vst.msk [vmem:[%s351] ss:$8 sm:$0x3] %vm220, %v344
        %353 = vst.msk [vmem:[%s351] ss:$8 sm:$0x0] %vm220, %v344
        %v354 = vmul.f32 %v262, %v167
        %v355 = vmul.f32 %v263, %v171
        %v356 = vmul.f32 %v264, %v173
        %v357 = vmul.f32 %v265, %v137
        %v358 = vmul.f32 %v266, %v141
        %v359 = vmul.f32 %v267, %v143
        %v360 = vadd.f32 %v354, %v357
        %v361 = vadd.f32 %v355, %v358
        %v362 = vadd.f32 %v356, %v359
        %s363 = scalar_lea.vmem %s132, 2 [#allocation5]
        %364 = vst [vmem:[%s363] ss:$8 sm:$0xf] %v360
        %365 = vst [vmem:[%s363] ss:$8 sm:$0xf0] %v360
        %s366 = scalar_lea.vmem %s132, 66 [#allocation5]
        %367 = vst [vmem:[%s366] ss:$8 sm:$0xf] %v361
        %368 = vst [vmem:[%s366] ss:$8 sm:$0xf0] %v361
        %s369 = scalar_lea.vmem %s132, 130 [#allocation5]
        %370 = vst.msk [vmem:[%s369] ss:$8 sm:$0x3] %vm220, %v362
        %371 = vst.msk [vmem:[%s369] ss:$8 sm:$0x0] %vm220, %v362
        %v372 = vsub.f32 %v354, %v357
        %v373 = vsub.f32 %v355, %v358
        %v374 = vsub.f32 %v356, %v359
        %s375 = scalar_lea.vmem %s132, 144 [#allocation5]
        %376 = vst [vmem:[%s375] ss:$8 sm:$0xf] %v372
        %377 = vst [vmem:[%s375] ss:$8 sm:$0xf0] %v372
        %s378 = scalar_lea.vmem %s132, 208 [#allocation5]
        %379 = vst [vmem:[%s378] ss:$8 sm:$0xf] %v373
        %380 = vst [vmem:[%s378] ss:$8 sm:$0xf0] %v373
        %s381 = scalar_lea.vmem %s132, 272 [#allocation5]
        %382 = vst.msk [vmem:[%s381] ss:$8 sm:$0x3] %vm220, %v374
        %383 = vst.msk [vmem:[%s381] ss:$8 sm:$0x0] %vm220, %v374
        %v384 = vmul.f32 %v265, %v167
        %v385 = vmul.f32 %v266, %v171
        %v386 = vmul.f32 %v267, %v173
        %v387 = vmul.f32 %v262, %v137
        %v388 = vmul.f32 %v263, %v141
        %v389 = vmul.f32 %v264, %v143
        %v390 = vsub.f32 %v384, %v387
        %v391 = vsub.f32 %v385, %v388
        %v392 = vsub.f32 %v386, %v389
        %s393 = scalar_lea.vmem %s132, 6 [#allocation5]
        %394 = vst [vmem:[%s393] ss:$8 sm:$0xf] %v390
        %395 = vst [vmem:[%s393] ss:$8 sm:$0xf0] %v390
        %s396 = scalar_lea.vmem %s132, 70 [#allocation5]
        %397 = vst [vmem:[%s396] ss:$8 sm:$0xf] %v391
        %398 = vst [vmem:[%s396] ss:$8 sm:$0xf0] %v391
        %s399 = scalar_lea.vmem %s132, 134 [#allocation5]
        %400 = vst.msk [vmem:[%s399] ss:$8 sm:$0x3] %vm220, %v392
        %401 = vst.msk [vmem:[%s399] ss:$8 sm:$0x0] %vm220, %v392
        %v402 = vadd.f32 %v384, %v387
        %v403 = vadd.f32 %v385, %v388
        %v404 = vadd.f32 %v386, %v389
        %s405 = scalar_lea.vmem %s132, 145 [#allocation5]
        %406 = vst [vmem:[%s405] ss:$8 sm:$0xf] %v402
        %407 = vst [vmem:[%s405] ss:$8 sm:$0xf0] %v402
        %s408 = scalar_lea.vmem %s132, 209 [#allocation5]
        %409 = vst [vmem:[%s408] ss:$8 sm:$0xf] %v403
        %410 = vst [vmem:[%s408] ss:$8 sm:$0xf0] %v403
        %s411 = scalar_lea.vmem %s132, 273 [#allocation5]
        %412 = vst.msk [vmem:[%s411] ss:$8 sm:$0x3] %vm220, %v404
        %413 = vst.msk [vmem:[%s411] ss:$8 sm:$0x0] %vm220, %v404
        %s414 = sand.u32 %s52, 1
        %s415 = scalar_lea.sflag [#allocation4], %s414
        %s416 = sand.u32 %s52, 1
        %s417 = smul.addr %s416, 288
        %s418 = scalar_lea.vmem [#allocation5], %s417
        // Predicated region
        $region29: #{tpu_custom_call.1} parent=23 // pred_check
          %p419 = pneg %p62
        $region30: #{tpu_custom_call.1} parent=23 // pred_check_branch
          %421 = sbr.rel (%p419) target = $region32
        $region31: #{tpu_custom_call.1} parent=23 // pred_region
          %s422 = smul.u32 18, %s18
          %s424 = ssub.s32 4608, 4608
          %425 = vsyncadd %s415, %s424
          %s426 = smul.addr %s422, 128
          %s427 = scalar_lea.hbm %s1, %s426
          %s428 = sshll.u32 %s418, 4
          %s429 = int_to_ptr.vmem [resolvable:$true] %s428
          %434 = dma.vmem_to_hbm [thread:$0]  %s429, 4608, %s427, %s415, 2304, 4608, 144
        $region32: #{tpu_custom_call.1} parent=23 // pred_fallthru
          _
      $region24: #{tpu_custom_call.1} parent=5 // pred_fallthru
        _
      %p435 = scmp.le.s32.totalorder 2, %s13
      // Predicated region
      $region33: #{tpu_custom_call.1} parent=5 // pred_check
        %p436 = pneg %p435
      $region34: #{tpu_custom_call.1} parent=5 // pred_check_branch
        %438 = sbr.rel (%p436) target = $region36
      $region35: #{tpu_custom_call.1} parent=5 // pred_region
        %s439 = ssub.s32 %s13, 2
        // Predicated region
        $region37: #{tpu_custom_call.1} parent=35 // pred_check
          %p440 = pneg %p68
        $region38: #{tpu_custom_call.1} parent=35 // pred_check_branch
          %442 = sbr.rel (%p440) target = $region40
        $region39: #{tpu_custom_call.1} parent=35 // pred_region
          %s443 = sand.u32 %s53, 1
          %s444 = scalar_lea.sflag [#allocation4], %s443
          %s445 = sand.u32 %s53, 1
          %s446 = smul.addr %s445, 288
          %s447 = scalar_lea.vmem [#allocation5], %s446
          %448 = dma.done %s444, 4608
        $region40: #{tpu_custom_call.1} parent=35 // pred_fallthru
          _
      $region36: #{tpu_custom_call.1} parent=5 // pred_fallthru
        _
    $region6: #{tpu_custom_call.1} parent=1 // loop_footer
      %s17 = sadd.s32 1, %s13
    $region7: #{tpu_custom_call.1} parent=1 // loop_footer_branch
      %12 = sbr.rel target = $region3
    $region8: #{tpu_custom_call.1} parent=1 // loop_exit
      _
    %449 = vsyncpa [#allocation3], 1
    %s450 = scalar_lea.sflag [#allocation3], 1
    %451 = vsyncpa %s450, 1
    %452 = vsyncpa [#allocation4], 1
    %s453 = scalar_lea.sflag [#allocation4], 1
    %454 = vsyncpa %s453, 1

</llo_original>
